<compile_context>
chip_gen: v7x
topology: tpu7x:2x2x1
jax: 0.10.0
libtpu: 0.0.40
codegen_flags: <defaults>
</compile_context>

<pallas_src>
import functools

import jax
import jax.numpy as jnp
from jax.experimental import pallas as pl
from jax.experimental.pallas import tpu as pltpu

LEAKY_SLOPE = 0.1
BN_EPS = 1e-5
HIDDEN = 128
LANE = 128


def _round_up(n, m):
    return ((n + m - 1) // m) * m


def _default_act_dtype():
    """bf16 activations on chips with bf16 VPUs (v6e/v7x); f32 on v5e and older."""
    try:
        kind = jax.devices()[0].device_kind.lower()
    except Exception:  # pragma: no cover
        kind = ""
    if any(tag in kind for tag in ("v2", "v3", "v4", "v5")):
        return jnp.float32
    return jnp.bfloat16


# ----------------------------- Pallas kernel -------------------------------
def _mlp_kernel(x_ref, w0_ref, ws_ref, b_ref, o_ref, *, act_dtype):
    """Fused line_model forward for one tile of rows.

    x_ref  : (row_tile, state_dim) f32   input rows (unpadded feature dim)
    w0_ref : (state_dim, 128)      bf16  stem weight (BN folded)
    ws_ref : (6, 128, 128)         bf16  [RB1.a, RB1.b, RB2.a, RB2.b, L3(pad), L4(pad)]
    b_ref  : (8, 128)              f32   biases, rows 0..6 used (BN folded, padded)
    o_ref  : (row_tile, 128)       bf16  lane-dense output (cols >= out_size are tanh(0)=0)
    """
    b = b_ref[...]

    def lin_lrelu(h, w, bias_row):
        # Linear -> (folded BatchNorm) -> LeakyReLU(0.1); Dropout = identity (eval).
        y = jnp.dot(h.astype(jnp.bfloat16), w,
                    preferred_element_type=jnp.float32) + b[bias_row]
        # LeakyReLU(slope) == max(y, slope*y) for 0 < slope < 1  (mul+max, no select).
        y = jnp.maximum(y, LEAKY_SLOPE * y)
        return y.astype(act_dtype)

    # Stem: Linear(D,128)+BN+LeakyReLU (input cast f32->bf16 here, in VMEM).
    h = lin_lrelu(x_ref[...], w0_ref[...], 0)

    # ResidualBlock(128,128) #1 — residual path is Identity (in == out)
    r = h
    h = lin_lrelu(h, ws_ref[0], 1)
    h = lin_lrelu(h, ws_ref[1], 2)
    h = h + r

    # ResidualBlock(128,128) #2
    r = h
    h = lin_lrelu(h, ws_ref[2], 3)
    h = lin_lrelu(h, ws_ref[3], 4)
    h = h + r

    # Linear(128,64)+BN+LeakyReLU — zero-padded to 128 lanes (padded cols stay 0)
    h = lin_lrelu(h, ws_ref[4], 5)

    # Linear(64,out)+Tanh — zero-padded to 128 lanes; store bf16 (lane-dense vst)
    y = jnp.dot(h.astype(jnp.bfloat16), ws_ref[5],
                preferred_element_type=jnp.float32) + b[6]
    o_ref[...] = jnp.tanh(y).astype(o_ref.dtype)


# ----------------------------- parameter init ------------------------------
def _normc_linear(key, in_f, out_f):
    """PyTorch normc_fn init: N(0,1) rows normalized over the input dim, bias=0."""
    w = jax.random.normal(key, (out_f, in_f), jnp.float32)
    w = w / jnp.sqrt(jnp.sum(w * w, axis=1, keepdims=True))
    b = jnp.zeros((out_f,), jnp.float32)
    return w.T, b  # (in_f, out_f) for x @ W


def _bn_fold(w, b, num_features):
    """Fold eval-mode BatchNorm1d (default params/stats) into Linear(w, b)."""
    gamma = jnp.ones((num_features,), jnp.float32)
    beta = jnp.zeros((num_features,), jnp.float32)
    running_mean = jnp.zeros((num_features,), jnp.float32)
    running_var = jnp.ones((num_features,), jnp.float32)
    scale = gamma / jnp.sqrt(running_var + BN_EPS)
    shift = beta - running_mean * scale
    return w * scale[None, :], b * scale + shift


def _pad2(w, rows, cols):
    return jnp.pad(w, ((0, rows - w.shape[0]), (0, cols - w.shape[1])))


def _pad1(b, n):
    return jnp.pad(b, (0, n - b.shape[0]))


def init_line_model_params(key, input_size, output_size):
    assert output_size <= LANE, "output_size > 128 not supported by this packing"
    keys = jax.random.split(key, 7)

    def lin_bn(k, fin, fout):
        w, b = _normc_linear(k, fin, fout)
        return _bn_fold(w, b, fout)

    w0, b0 = lin_bn(keys[0], input_size, HIDDEN)       # stem
    w1a, b1a = lin_bn(keys[1], HIDDEN, HIDDEN)         # RB1.a
    w1b, b1b = lin_bn(keys[2], HIDDEN, HIDDEN)         # RB1.b
    w2a, b2a = lin_bn(keys[3], HIDDEN, HIDDEN)         # RB2.a
    w2b, b2b = lin_bn(keys[4], HIDDEN, HIDDEN)         # RB2.b
    w3, b3 = lin_bn(keys[5], HIDDEN, 64)               # Linear(128,64)+BN
    w4, b4 = _normc_linear(keys[6], 64, output_size)   # Linear(64,out)

    # Lane-dense padding: hidden 64 -> 128, output -> 128 (extra cols/rows are 0).
    w0p = w0.astype(jnp.bfloat16)                      # (input_size, 128), no pad
    w3p = _pad2(w3, HIDDEN, HIDDEN)
    w4p = _pad2(w4, HIDDEN, LANE)
    w_stack = jnp.stack([w1a, w1b, w2a, w2b, w3p, w4p]).astype(jnp.bfloat16)

    b_stack = jnp.zeros((8, LANE), jnp.float32)
    for i, bi in enumerate([b0, b1a, b1b, b2a, b2b, _pad1(b3, LANE), _pad1(b4, LANE)]):
        b_stack = b_stack.at[i].set(bi)

    return (w0p, w_stack, b_stack)


# ------------------------------ host wrapper -------------------------------
def _choose_tile(rows, row_tile):
    """Row-tile choice: big tiles (low per-step overhead), multiple of 16 (bf16
    sublane packing), and >= ~4 grid steps when rows allow so v7x's two
    TensorCores both get work on the "parallel" axis."""
    rows16 = _round_up(rows, 16)
    if rows16 <= 256:
        return rows16
    tile = min(row_tile, max(256, _round_up(pl.cdiv(rows16, 4), 16)))
    return _round_up(tile, 16)


def line_model_forward(params, x, *, output_size, row_tile=1024, act_dtype=None):
    """Matches line_model.forward: accepts 1D/2D/3D input (seq, batch, state_dim)."""
    w0, w_stack, b_stack = params
    if act_dtype is None:
        act_dtype = _default_act_dtype()

    if x.ndim == 1:
        x = x[None, None, :]
    elif x.ndim == 2:
        x = x[None, :, :]
    elif x.ndim == 3:
        pass
    else:
        raise ValueError(f"Expected 1D, 2D or 3D input, but got {x.ndim}D input")

    seq, batch, state_dim = x.shape
    assert state_dim == w0.shape[0], "params/input feature-dim mismatch"
    rows = seq * batch

    # No lane-dim padding / dtype cast in HBM: the kernel reads x as-is (f32,
    # last dim = state_dim == full array dim) and casts to bf16 in VMEM.
    x2 = x.reshape(rows, state_dim)

    tile = _choose_tile(rows, row_tile)
    rows_pad = _round_up(rows, tile)
    if rows_pad != rows:
        x2 = jnp.pad(x2, ((0, rows_pad - rows), (0, 0)))

    grid = (rows_pad // tile,)
    kernel = functools.partial(_mlp_kernel, act_dtype=act_dtype)

    y = pl.pallas_call(
        kernel,
        out_shape=jax.ShapeDtypeStruct((rows_pad, LANE), jnp.bfloat16),
        grid=grid,
        in_specs=[
            pl.BlockSpec((tile, state_dim), lambda i: (i, 0)),        # input rows
            pl.BlockSpec(w0.shape, lambda i: (0, 0)),                 # stem weight (resident)
            pl.BlockSpec(w_stack.shape, lambda i: (0, 0, 0)),         # stacked weights (resident)
            pl.BlockSpec(b_stack.shape, lambda i: (0, 0)),            # biases (resident)
        ],
        out_specs=pl.BlockSpec((tile, LANE), lambda i: (i, 0)),
        compiler_params=pltpu.CompilerParams(
            dimension_semantics=("parallel",)),
    )(x2, w0, w_stack, b_stack)

    # Keep the slice/cast inside the caller's jit so XLA fuses it with consumers
    # (no standalone HBM copy pass).
    y = y[:rows, :output_size].astype(jnp.float32)
    return y.reshape(seq, batch, output_size)


# --------------------------- pure-JAX reference -----------------------------
def _reference_forward(params, x, *, output_size, act_dtype):
    """Mirrors the kernel math (bf16 matmul inputs, f32 accumulate, bf16 store)."""
    w0, w_stack, b_stack = params
    if x.ndim == 1:
        x = x[None, None, :]
    elif x.ndim == 2:
        x = x[None, :, :]
    seq, batch, state_dim = x.shape
    h = x.reshape(seq * batch, state_dim)
    b = b_stack

    def lin_lrelu(h, w, i):
        y = jnp.dot(h.astype(jnp.bfloat16), w,
                    preferred_element_type=jnp.float32) + b[i]
        y = jnp.maximum(y, LEAKY_SLOPE * y)
        return y.astype(act_dtype)

    h = lin_lrelu(h, w0, 0)
    r = h
    h = lin_lrelu(h, w_stack[0], 1)
    h = lin_lrelu(h, w_stack[1], 2)
    h = h + r
    r = h
    h = lin_lrelu(h, w_stack[2], 3)
    h = lin_lrelu(h, w_stack[3], 4)
    h = h + r
    h = lin_lrelu(h, w_stack[4], 5)
    y = jnp.dot(h.astype(jnp.bfloat16), w_stack[5],
                preferred_element_type=jnp.float32) + b[6]
    y = jnp.tanh(y).astype(jnp.bfloat16).astype(jnp.float32)[:, :output_size]
    return y.reshape(seq, batch, output_size)


# --------------------------------- main -------------------------------------
if __name__ == "__main__":
    input_size = 32
    output_size = 8
    seq_len, batch = 8, 2

    root = jax.random.PRNGKey(0)
    k_params, k_x = jax.random.split(root)

    params = init_line_model_params(k_params, input_size, output_size)
    x = jax.random.normal(k_x, (seq_len, batch, input_size), jnp.float32)

    act_dtype = _default_act_dtype()
    fwd = jax.jit(functools.partial(
        line_model_forward, output_size=output_size, act_dtype=act_dtype))
    y = fwd(params, x)
    jax.block_until_ready(y)

    assert y.shape == (seq_len, batch, output_size), y.shape
    assert bool(jnp.all(jnp.isfinite(y)))
    assert bool(jnp.all(jnp.abs(y) <= 1.0))  # tanh output range

    y_ref = _reference_forward(params, x, output_size=output_size, act_dtype=act_dtype)
    max_err = float(jnp.max(jnp.abs(y - y_ref)))
    assert max_err < 2e-2, f"mismatch vs reference: {max_err}"

    print("KERNEL_OK")
</pallas_src>

<mosaic_0001>
module attributes {stable_mosaic.version = 11 : i64} {
  func.func @_mlp_kernel(%arg0: i32, %arg1: memref<16x32xf32, #tpu.memory_space<vmem>>, %arg2: memref<32x128xbf16, #tpu.memory_space<vmem>>, %arg3: memref<6x128x128xbf16, #tpu.memory_space<vmem>>, %arg4: memref<8x128xf32, #tpu.memory_space<vmem>>, %arg5: memref<16x128xbf16, #tpu.memory_space<vmem>>) attributes {dimension_semantics = [#tpu.dimension_semantics<parallel>], iteration_bounds = array<i64: 1>, scalar_prefetch = 0 : i64, scratch_operands = 0 : i64, tpu.core_type = #tpu.core_type<tc>, window_params = [{transform_indices = @transform_0, window_bounds = array<i64: 16, 32>}, {pipeline_mode = #tpu.pipeline_mode<synchronous>, transform_indices = @transform_1, window_bounds = array<i64: 32, 128>}, {pipeline_mode = #tpu.pipeline_mode<synchronous>, transform_indices = @transform_2, window_bounds = array<i64: 6, 128, 128>}, {pipeline_mode = #tpu.pipeline_mode<synchronous>, transform_indices = @transform_3, window_bounds = array<i64: 8, 128>}, {transform_indices = @transform_4, window_bounds = array<i64: 16, 128>}]} {
    %c0 = arith.constant 0 : index
    %c0_0 = arith.constant 0 : index
    %0 = vector.load %arg4[%c0, %c0_0] : memref<8x128xf32, #tpu.memory_space<vmem>>, vector<8x128xf32>
    %c0_1 = arith.constant 0 : index
    %c0_2 = arith.constant 0 : index
    %1 = vector.load %arg1[%c0_1, %c0_2] : memref<16x32xf32, #tpu.memory_space<vmem>>, vector<16x32xf32>
    %c0_3 = arith.constant 0 : index
    %c0_4 = arith.constant 0 : index
    %2 = vector.load %arg2[%c0_3, %c0_4] : memref<32x128xbf16, #tpu.memory_space<vmem>>, vector<32x128xbf16>
    %3 = arith.truncf %1 : vector<16x32xf32> to vector<16x32xbf16>
    %cst = arith.constant dense<0.000000e+00> : vector<16x128xf32>
    %4 = tpu.matmul %3, %2, %cst {dimension_numbers = #tpu.dot_dimension_numbers<[1], [0], [0], [1], [0, 0, 1, 1], [], []>} : vector<16x32xbf16>, vector<32x128xbf16>, vector<16x128xf32> -> vector<16x128xf32>
    %5 = vector.extract_strided_slice %0 {offsets = [0, 0], sizes = [1, 128], strides = [1, 1]} : vector<8x128xf32> to vector<1x128xf32>
    %6 = vector.shape_cast %5 : vector<1x128xf32> to vector<128xf32>
    %7 = vector.shape_cast %6 : vector<128xf32> to vector<1x128xf32>
    %8 = vector.broadcast %7 : vector<1x128xf32> to vector<16x128xf32>
    %9 = arith.addf %4, %8 : vector<16x128xf32>
    %cst_5 = arith.constant 1.000000e-01 : f32
    %10 = vector.broadcast %cst_5 : f32 to vector<16x128xf32>
    %11 = arith.mulf %10, %9 : vector<16x128xf32>
    %12 = arith.maximumf %9, %11 : vector<16x128xf32>
    %13 = arith.truncf %12 : vector<16x128xf32> to vector<16x128xbf16>
    %c0_6 = arith.constant 0 : index
    %c0_7 = arith.constant 0 : index
    %c0_8 = arith.constant 0 : index
    %14 = vector.load %arg3[%c0_6, %c0_7, %c0_8] : memref<6x128x128xbf16, #tpu.memory_space<vmem>>, vector<1x128x128xbf16>
    %15 = vector.shape_cast %14 : vector<1x128x128xbf16> to vector<128x128xbf16>
    %cst_9 = arith.constant dense<0.000000e+00> : vector<16x128xf32>
    %16 = tpu.matmul %13, %15, %cst_9 {dimension_numbers = #tpu.dot_dimension_numbers<[1], [0], [0], [1], [0, 0, 1, 1], [], []>} : vector<16x128xbf16>, vector<128x128xbf16>, vector<16x128xf32> -> vector<16x128xf32>
    %17 = vector.extract_strided_slice %0 {offsets = [1, 0], sizes = [1, 128], strides = [1, 1]} : vector<8x128xf32> to vector<1x128xf32>
    %18 = vector.shape_cast %17 : vector<1x128xf32> to vector<128xf32>
    %19 = vector.shape_cast %18 : vector<128xf32> to vector<1x128xf32>
    %20 = vector.broadcast %19 : vector<1x128xf32> to vector<16x128xf32>
    %21 = arith.addf %16, %20 : vector<16x128xf32>
    %cst_10 = arith.constant 1.000000e-01 : f32
    %22 = vector.broadcast %cst_10 : f32 to vector<16x128xf32>
    %23 = arith.mulf %22, %21 : vector<16x128xf32>
    %24 = arith.maximumf %21, %23 : vector<16x128xf32>
    %25 = arith.truncf %24 : vector<16x128xf32> to vector<16x128xbf16>
    %c1 = arith.constant 1 : index
    %c0_11 = arith.constant 0 : index
    %c0_12 = arith.constant 0 : index
    %26 = vector.load %arg3[%c1, %c0_11, %c0_12] : memref<6x128x128xbf16, #tpu.memory_space<vmem>>, vector<1x128x128xbf16>
    %27 = vector.shape_cast %26 : vector<1x128x128xbf16> to vector<128x128xbf16>
    %cst_13 = arith.constant dense<0.000000e+00> : vector<16x128xf32>
    %28 = tpu.matmul %25, %27, %cst_13 {dimension_numbers = #tpu.dot_dimension_numbers<[1], [0], [0], [1], [0, 0, 1, 1], [], []>} : vector<16x128xbf16>, vector<128x128xbf16>, vector<16x128xf32> -> vector<16x128xf32>
    %29 = vector.extract_strided_slice %0 {offsets = [2, 0], sizes = [1, 128], strides = [1, 1]} : vector<8x128xf32> to vector<1x128xf32>
    %30 = vector.shape_cast %29 : vector<1x128xf32> to vector<128xf32>
    %31 = vector.shape_cast %30 : vector<128xf32> to vector<1x128xf32>
    %32 = vector.broadcast %31 : vector<1x128xf32> to vector<16x128xf32>
    %33 = arith.addf %28, %32 : vector<16x128xf32>
    %cst_14 = arith.constant 1.000000e-01 : f32
    %34 = vector.broadcast %cst_14 : f32 to vector<16x128xf32>
    %35 = arith.mulf %34, %33 : vector<16x128xf32>
    %36 = arith.maximumf %33, %35 : vector<16x128xf32>
    %37 = arith.truncf %36 : vector<16x128xf32> to vector<16x128xbf16>
    %38 = arith.addf %37, %13 : vector<16x128xbf16>
    %c2 = arith.constant 2 : index
    %c0_15 = arith.constant 0 : index
    %c0_16 = arith.constant 0 : index
    %39 = vector.load %arg3[%c2, %c0_15, %c0_16] : memref<6x128x128xbf16, #tpu.memory_space<vmem>>, vector<1x128x128xbf16>
    %40 = vector.shape_cast %39 : vector<1x128x128xbf16> to vector<128x128xbf16>
    %cst_17 = arith.constant dense<0.000000e+00> : vector<16x128xf32>
    %41 = tpu.matmul %38, %40, %cst_17 {dimension_numbers = #tpu.dot_dimension_numbers<[1], [0], [0], [1], [0, 0, 1, 1], [], []>} : vector<16x128xbf16>, vector<128x128xbf16>, vector<16x128xf32> -> vector<16x128xf32>
    %42 = vector.extract_strided_slice %0 {offsets = [3, 0], sizes = [1, 128], strides = [1, 1]} : vector<8x128xf32> to vector<1x128xf32>
    %43 = vector.shape_cast %42 : vector<1x128xf32> to vector<128xf32>
    %44 = vector.shape_cast %43 : vector<128xf32> to vector<1x128xf32>
    %45 = vector.broadcast %44 : vector<1x128xf32> to vector<16x128xf32>
    %46 = arith.addf %41, %45 : vector<16x128xf32>
    %cst_18 = arith.constant 1.000000e-01 : f32
    %47 = vector.broadcast %cst_18 : f32 to vector<16x128xf32>
    %48 = arith.mulf %47, %46 : vector<16x128xf32>
    %49 = arith.maximumf %46, %48 : vector<16x128xf32>
    %50 = arith.truncf %49 : vector<16x128xf32> to vector<16x128xbf16>
    %c3 = arith.constant 3 : index
    %c0_19 = arith.constant 0 : index
    %c0_20 = arith.constant 0 : index
    %51 = vector.load %arg3[%c3, %c0_19, %c0_20] : memref<6x128x128xbf16, #tpu.memory_space<vmem>>, vector<1x128x128xbf16>
    %52 = vector.shape_cast %51 : vector<1x128x128xbf16> to vector<128x128xbf16>
    %cst_21 = arith.constant dense<0.000000e+00> : vector<16x128xf32>
    %53 = tpu.matmul %50, %52, %cst_21 {dimension_numbers = #tpu.dot_dimension_numbers<[1], [0], [0], [1], [0, 0, 1, 1], [], []>} : vector<16x128xbf16>, vector<128x128xbf16>, vector<16x128xf32> -> vector<16x128xf32>
    %54 = vector.extract_strided_slice %0 {offsets = [4, 0], sizes = [1, 128], strides = [1, 1]} : vector<8x128xf32> to vector<1x128xf32>
    %55 = vector.shape_cast %54 : vector<1x128xf32> to vector<128xf32>
    %56 = vector.shape_cast %55 : vector<128xf32> to vector<1x128xf32>
    %57 = vector.broadcast %56 : vector<1x128xf32> to vector<16x128xf32>
    %58 = arith.addf %53, %57 : vector<16x128xf32>
    %cst_22 = arith.constant 1.000000e-01 : f32
    %59 = vector.broadcast %cst_22 : f32 to vector<16x128xf32>
    %60 = arith.mulf %59, %58 : vector<16x128xf32>
    %61 = arith.maximumf %58, %60 : vector<16x128xf32>
    %62 = arith.truncf %61 : vector<16x128xf32> to vector<16x128xbf16>
    %63 = arith.addf %62, %38 : vector<16x128xbf16>
    %c4 = arith.constant 4 : index
    %c0_23 = arith.constant 0 : index
    %c0_24 = arith.constant 0 : index
    %64 = vector.load %arg3[%c4, %c0_23, %c0_24] : memref<6x128x128xbf16, #tpu.memory_space<vmem>>, vector<1x128x128xbf16>
    %65 = vector.shape_cast %64 : vector<1x128x128xbf16> to vector<128x128xbf16>
    %cst_25 = arith.constant dense<0.000000e+00> : vector<16x128xf32>
    %66 = tpu.matmul %63, %65, %cst_25 {dimension_numbers = #tpu.dot_dimension_numbers<[1], [0], [0], [1], [0, 0, 1, 1], [], []>} : vector<16x128xbf16>, vector<128x128xbf16>, vector<16x128xf32> -> vector<16x128xf32>
    %67 = vector.extract_strided_slice %0 {offsets = [5, 0], sizes = [1, 128], strides = [1, 1]} : vector<8x128xf32> to vector<1x128xf32>
    %68 = vector.shape_cast %67 : vector<1x128xf32> to vector<128xf32>
    %69 = vector.shape_cast %68 : vector<128xf32> to vector<1x128xf32>
    %70 = vector.broadcast %69 : vector<1x128xf32> to vector<16x128xf32>
    %71 = arith.addf %66, %70 : vector<16x128xf32>
    %cst_26 = arith.constant 1.000000e-01 : f32
    %72 = vector.broadcast %cst_26 : f32 to vector<16x128xf32>
    %73 = arith.mulf %72, %71 : vector<16x128xf32>
    %74 = arith.maximumf %71, %73 : vector<16x128xf32>
    %75 = arith.truncf %74 : vector<16x128xf32> to vector<16x128xbf16>
    %c5 = arith.constant 5 : index
    %c0_27 = arith.constant 0 : index
    %c0_28 = arith.constant 0 : index
    %76 = vector.load %arg3[%c5, %c0_27, %c0_28] : memref<6x128x128xbf16, #tpu.memory_space<vmem>>, vector<1x128x128xbf16>
    %77 = vector.shape_cast %76 : vector<1x128x128xbf16> to vector<128x128xbf16>
    %cst_29 = arith.constant dense<0.000000e+00> : vector<16x128xf32>
    %78 = tpu.matmul %75, %77, %cst_29 {dimension_numbers = #tpu.dot_dimension_numbers<[1], [0], [0], [1], [0, 0, 1, 1], [], []>} : vector<16x128xbf16>, vector<128x128xbf16>, vector<16x128xf32> -> vector<16x128xf32>
    %79 = vector.extract_strided_slice %0 {offsets = [6, 0], sizes = [1, 128], strides = [1, 1]} : vector<8x128xf32> to vector<1x128xf32>
    %80 = vector.shape_cast %79 : vector<1x128xf32> to vector<128xf32>
    %81 = vector.shape_cast %80 : vector<128xf32> to vector<1x128xf32>
    %82 = vector.broadcast %81 : vector<1x128xf32> to vector<16x128xf32>
    %83 = arith.addf %78, %82 : vector<16x128xf32>
    %84 = math.tanh %83 : vector<16x128xf32>
    %85 = arith.truncf %84 : vector<16x128xf32> to vector<16x128xbf16>
    %c0_30 = arith.constant 0 : index
    %c0_31 = arith.constant 0 : index
    %86 = vector.load %arg5[%c0_30, %c0_31] : memref<16x128xbf16, #tpu.memory_space<vmem>>, vector<16x128xbf16>
    tpu.vector_store %arg5[%c0_30, %c0_31], %85 {strides = array<i32>} : memref<16x128xbf16, #tpu.memory_space<vmem>>, vector<16x128xbf16>,
    return
  }
  func.func @transform_0(%arg0: i32) -> (i32, i32) {
    %c0_i32 = arith.constant 0 : i32
    %c0_i32_0 = arith.constant 0 : i32
    return %arg0, %c0_i32 : i32, i32
  }
  func.func @transform_1(%arg0: i32) -> (i32, i32) {
    %c0_i32 = arith.constant 0 : i32
    %c0_i32_0 = arith.constant 0 : i32
    %c0_i32_1 = arith.constant 0 : i32
    return %c0_i32, %c0_i32_0 : i32, i32
  }
  func.func @transform_2(%arg0: i32) -> (i32, i32, i32) {
    %c0_i32 = arith.constant 0 : i32
    %c0_i32_0 = arith.constant 0 : i32
    %c0_i32_1 = arith.constant 0 : i32
    %c0_i32_2 = arith.constant 0 : i32
    return %c0_i32, %c0_i32_0, %c0_i32_1 : i32, i32, i32
  }
  func.func @transform_3(%arg0: i32) -> (i32, i32) {
    %c0_i32 = arith.constant 0 : i32
    %c0_i32_0 = arith.constant 0 : i32
    %c0_i32_1 = arith.constant 0 : i32
    return %c0_i32, %c0_i32_0 : i32, i32
  }
  func.func @transform_4(%arg0: i32) -> (i32, i32) {
    %c0_i32 = arith.constant 0 : i32
    %c0_i32_0 = arith.constant 0 : i32
    return %arg0, %c0_i32 : i32, i32
  }
}

</mosaic_0001>

<llo_original>
// kernel: line_model_forward.1
$region0: #{line_model_forward.1}
  #allocation0 [shape = 'u32[]', space=smem, size = 0x4, offset = 0x4, fixed_abs, tag = 'smem constant byte address 0x4 - core index']
  #allocation1 [shape = 'u32[144,128]{1,0:T(1,128)}', space=vmem, size = 0x12000, scoped, tag = 'internal scratch']
  %s0 = inlined_call_operand.hbm [shape: f32[16,32], index: 0, kind: input, shape index: {}]
  %s1 = inlined_call_operand.hbm [shape: bf16[32,128], index: 1, kind: input, shape index: {}]
  %s2 = inlined_call_operand.hbm [shape: bf16[6,128,128], index: 2, kind: input, shape index: {}]
  %s3 = inlined_call_operand.vmem [shape: f32[8,128], index: 3, kind: input, shape index: {}]
  %s4 = inlined_call_operand.vmem [shape: bf16[16,128], index: 4, kind: output, shape index: {}]
  %s5 = sld [smem:[#allocation0]]
  $region38: #{line_model_forward.1} parent=0
    _
  %s7 = ssub.s32 1, %s5
  %s8 = scalar_select 0, %s7, %s5
  $region1: #{line_model_forward.1} parent=0
    #allocation2 [shape = 'u8[8192]{0}', space=vmem, size = 0x2000, scoped, tag = 'input window, operand 0, single buffered']
    #allocation3 [shape = 's32[1]{0}', space=sflag, size = 0x4, scoped, tag = 'scoped memory for line_model_forward.1']
    #allocation4 [shape = 'u8[8192]{0}', space=vmem, size = 0x2000, scoped, tag = 'input window, operand 1, single buffered']
    #allocation5 [shape = 's32[1]{0}', space=sflag, size = 0x4, scoped, tag = 'scoped memory for line_model_forward.1']
    #allocation6 [shape = 'u8[196608]{0}', space=vmem, size = 0x30000, scoped, tag = 'input window, operand 2, single buffered']
    %9 = vsyncpa [#allocation3], 0
    %10 = vsyncpa [#allocation5], 0
    // Predicated region
    $region2: #{line_model_forward.1} parent=1 // pred_check
      _
    $region3: #{line_model_forward.1} parent=1 // pred_check_branch
      %12 = sbr.rel (0) target = $region5
    $region4: #{line_model_forward.1} parent=1 // pred_region
      %s14 = ssub.s32 256, 256
      %15 = vsyncadd [#allocation3], %s14
      %s16 = sshll.u32 [#allocation2], 4
      %s17 = int_to_ptr.vmem [resolvable:$true] %s16
      %22 = dma.hbm_to_vmem [thread:$0]  %s0, 256, %s17, [#allocation3], 128, 128, 8
    $region5: #{line_model_forward.1} parent=1 // pred_fallthru
      _
    // Predicated region
    $region6: #{line_model_forward.1} parent=1 // pred_check
      _
    $region7: #{line_model_forward.1} parent=1 // pred_check_branch
      %24 = sbr.rel (0) target = $region9
    $region8: #{line_model_forward.1} parent=1 // pred_region
      %s26 = ssub.s32 256, 256
      %27 = vsyncadd [#allocation5], %s26
      %s28 = sshll.u32 [#allocation4], 4
      %s29 = int_to_ptr.vmem [resolvable:$true] %s28
      %34 = dma.hbm_to_vmem [thread:$0]  %s1, 256, %s29, [#allocation5], 64, 64, 4
    $region9: #{line_model_forward.1} parent=1 // pred_fallthru
      _
    // Predicated region
    $region10: #{line_model_forward.1} parent=1 // pred_check
      _
    $region11: #{line_model_forward.1} parent=1 // pred_check_branch
      %36 = sbr.rel (0) target = $region13
    $region12: #{line_model_forward.1} parent=1 // pred_region
      %s38 = ssub.s32 6144, 6144
      %39 = vsyncadd [#allocation5], %s38
      %s40 = sshll.u32 [#allocation6], 4
      %s41 = int_to_ptr.vmem [resolvable:$true] %s40
      %46 = dma.hbm_to_vmem [thread:$0]  %s2, 6144, %s41, [#allocation5], 64, 64, 4
    $region13: #{line_model_forward.1} parent=1 // pred_fallthru
      _
    // Predicated region
    $region14: #{line_model_forward.1} parent=1 // pred_check
      _
    $region15: #{line_model_forward.1} parent=1 // pred_check_branch
      %48 = sbr.rel (0) target = $region17
    $region16: #{line_model_forward.1} parent=1 // pred_region
      _
    $region17: #{line_model_forward.1} parent=1 // pred_fallthru
      _
    // Predicated region
    $region18: #{line_model_forward.1} parent=1 // pred_check
      _
    $region19: #{line_model_forward.1} parent=1 // pred_check_branch
      %50 = sbr.rel (0) target = $region21
    $region20: #{line_model_forward.1} parent=1 // pred_region
      %51 = dma.done [#allocation3], 256
    $region21: #{line_model_forward.1} parent=1 // pred_fallthru
      _
    // Predicated region
    $region22: #{line_model_forward.1} parent=1 // pred_check
      _
    $region23: #{line_model_forward.1} parent=1 // pred_check_branch
      %53 = sbr.rel (0) target = $region25
    $region24: #{line_model_forward.1} parent=1 // pred_region
      %54 = dma.done [#allocation5], 256
    $region25: #{line_model_forward.1} parent=1 // pred_fallthru
      _
    // Predicated region
    $region26: #{line_model_forward.1} parent=1 // pred_check
      _
    $region27: #{line_model_forward.1} parent=1 // pred_check_branch
      %56 = sbr.rel (0) target = $region29
    $region28: #{line_model_forward.1} parent=1 // pred_region
      %57 = dma.done [#allocation5], 6144
    $region29: #{line_model_forward.1} parent=1 // pred_fallthru
      _
    %v59 = vld [vmem:[%s3] sm:$0xff]
    %v60 = vld [vmem:[#allocation2] sm:$0xff]
    %v61 = vld [vmem:[#allocation2 + $0x8] sm:$0xff]
    %v62 = vld [vmem:[#allocation4] sm:$0xf]
    %v63 = vld [vmem:[#allocation4 + $0x4] sm:$0xf]
    %v64 = vld [vmem:[#allocation4 + $0x8] sm:$0xf]
    %v65 = vld [vmem:[#allocation4 + $0xc] sm:$0xf]
    %v66 = vpack.c.bf16 %v61, %v60
    %v67 = vlaneseq
    %v68 = vshrl.u32 %v67, 7
    %v69 = vsub.s32 0, %v68
    %v70 = vrot.slane %v59, %v69
    %v75 = vunpack.c.l.b16 %v62
    %v76 = vunpack.c.l.b16 %v63
    %v77 = vunpack.c.l.b16 %v64
    %v78 = vunpack.c.l.b16 %v65
    %v79 = vpack.c.b16 %v76, %v75
    %v80 = vpack.c.b16 %v78, %v77
    %vm83 = vcmask 261120
    %v85 = vsel %vm83, %v66, 0
    %87 = vmatprep.subr.bf16.mxu0 0
    %88 = vmatpush1.bf16.msra.mxu0 %v79
    %89 = vmatprep.subr.bf16.mxu0 0
    %90 = vmatpush1.bf16.msra.mxu0 %v80
    %91 = vmatprep.subr.bf16.mxu0 0
    %92 = vmatpush1.bf16.msra.mxu0 0
    %93 = vmatprep.subr.bf16.mxu0 0
    %94 = vmatpush1.bf16.msra.mxu0 0
    %95 = vmatprep.subr.bf16.mxu0 0
    %96 = vmatpush1.bf16.msra.mxu0 0
    %97 = vmatprep.subr.bf16.mxu0 0
    %98 = vmatpush1.bf16.msra.mxu0 0
    %99 = vmatprep.subr.bf16.mxu0 0
    %100 = vmatpush1.bf16.msra.mxu0 0
    %101 = vmatprep.subr.bf16.mxu0 0
    %102 = vmatpush1.bf16.msra.mxu0 0
    %103 = vmatprep.subr.bf16.mxu0 0
    %104 = vmatpush1.bf16.msra.mxu0 0
    %105 = vmatprep.subr.bf16.mxu0 0
    %106 = vmatpush1.bf16.msra.mxu0 0
    %107 = vmatprep.subr.bf16.mxu0 0
    %108 = vmatpush1.bf16.msra.mxu0 0
    %109 = vmatprep.subr.bf16.mxu0 0
    %110 = vmatpush1.bf16.msra.mxu0 0
    %111 = vmatprep.subr.bf16.mxu0 0
    %112 = vmatpush1.bf16.msra.mxu0 0
    %113 = vmatprep.subr.bf16.mxu0 0
    %114 = vmatpush1.bf16.msra.mxu0 0
    %115 = vmatprep.subr.bf16.mxu0 0
    %116 = vmatpush1.bf16.msra.mxu0 0
    %117 = vmatprep.subr.bf16.mxu0 0
    %118 = vmatpush1.bf16.msra.mxu0 0
    %119 = vmatprep.mubr.bf16.mxu0 0
    %120 = vmatmul.mubr.bf16.gmra.mrb[0].mxu0 %v85
    %v121 = vpop.f32.mrb[0].mxu0
    %v122 = vadd.f32 %v70, %v121
    %v123 = vpop.f32.mrb[0].mxu0
    %v124 = vpop.f32.mrb[0].mxu0
    %v125 = vadd.f32 %v70, %v124
    %v126 = vpop.f32.mrb[0].mxu0
    %127 = vdwg.mxu0
    %v128 = vmul.f32 %v122, 0.1
    %v129 = vmul.f32 %v125, 0.1
    %v130 = vmax.f32 %v122, %v128
    %v131 = vmax.f32 %v125, %v129
    %v132 = vpack.c.bf16 %v131, %v130
    %v133 = vld [vmem:[#allocation6] sm:$0xf]
    %v134 = vld [vmem:[#allocation6 + $0x4] sm:$0xf]
    %v135 = vld [vmem:[#allocation6 + $0x8] sm:$0xf]
    %v136 = vld [vmem:[#allocation6 + $0xc] sm:$0xf]
    %v137 = vld [vmem:[#allocation6 + $0x10] sm:$0xf]
    %v138 = vld [vmem:[#allocation6 + $0x14] sm:$0xf]
    %v139 = vld [vmem:[#allocation6 + $0x18] sm:$0xf]
    %v140 = vld [vmem:[#allocation6 + $0x1c] sm:$0xf]
    %v141 = vld [vmem:[#allocation6 + $0x20] sm:$0xf]
    %v142 = vld [vmem:[#allocation6 + $0x24] sm:$0xf]
    %v143 = vld [vmem:[#allocation6 + $0x28] sm:$0xf]
    %v144 = vld [vmem:[#allocation6 + $0x2c] sm:$0xf]
    %v145 = vld [vmem:[#allocation6 + $0x30] sm:$0xf]
    %v146 = vld [vmem:[#allocation6 + $0x34] sm:$0xf]
    %v147 = vld [vmem:[#allocation6 + $0x38] sm:$0xf]
    %v148 = vld [vmem:[#allocation6 + $0x3c] sm:$0xf]
    %v149 = vlaneseq
    %v150 = vshrl.u32 %v149, 7
    %v151 = vsub.s32 1, %v150
    %v152 = vrot.slane %v59, %v151
    %v169 = vunpack.c.l.b16 %v133
    %v170 = vunpack.c.l.b16 %v134
    %v171 = vunpack.c.l.b16 %v135
    %v172 = vunpack.c.l.b16 %v136
    %v173 = vunpack.c.l.b16 %v137
    %v174 = vunpack.c.l.b16 %v138
    %v175 = vunpack.c.l.b16 %v139
    %v176 = vunpack.c.l.b16 %v140
    %v177 = vunpack.c.l.b16 %v141
    %v178 = vunpack.c.l.b16 %v142
    %v179 = vunpack.c.l.b16 %v143
    %v180 = vunpack.c.l.b16 %v144
    %v181 = vunpack.c.l.b16 %v145
    %v182 = vunpack.c.l.b16 %v146
    %v183 = vunpack.c.l.b16 %v147
    %v184 = vunpack.c.l.b16 %v148
    %v185 = vpack.c.b16 %v170, %v169
    %v186 = vpack.c.b16 %v172, %v171
    %v187 = vpack.c.b16 %v174, %v173
    %v188 = vpack.c.b16 %v176, %v175
    %v189 = vpack.c.b16 %v178, %v177
    %v190 = vpack.c.b16 %v180, %v179
    %v191 = vpack.c.b16 %v182, %v181
    %v192 = vpack.c.b16 %v184, %v183
    %201 = vmatprep.subr.bf16.mxu0 0
    %202 = vmatpush1.bf16.msra.mxu0 %v185
    %203 = vmatprep.subr.bf16.mxu0 0
    %204 = vmatpush1.bf16.msra.mxu0 %v186
    %205 = vmatprep.subr.bf16.mxu0 0
    %206 = vmatpush1.bf16.msra.mxu0 %v187
    %207 = vmatprep.subr.bf16.mxu0 0
    %208 = vmatpush1.bf16.msra.mxu0 %v188
    %209 = vmatprep.subr.bf16.mxu0 0
    %210 = vmatpush1.bf16.msra.mxu0 %v189
    %211 = vmatprep.subr.bf16.mxu0 0
    %212 = vmatpush1.bf16.msra.mxu0 %v190
    %213 = vmatprep.subr.bf16.mxu0 0
    %214 = vmatpush1.bf16.msra.mxu0 %v191
    %215 = vmatprep.subr.bf16.mxu0 0
    %216 = vmatpush1.bf16.msra.mxu0 %v192
    %217 = vmatprep.subr.bf16.mxu0 0
    %218 = vmatpush1.bf16.msra.mxu0 0
    %219 = vmatprep.subr.bf16.mxu0 0
    %220 = vmatpush1.bf16.msra.mxu0 0
    %221 = vmatprep.subr.bf16.mxu0 0
    %222 = vmatpush1.bf16.msra.mxu0 0
    %223 = vmatprep.subr.bf16.mxu0 0
    %224 = vmatpush1.bf16.msra.mxu0 0
    %225 = vmatprep.subr.bf16.mxu0 0
    %226 = vmatpush1.bf16.msra.mxu0 0
    %227 = vmatprep.subr.bf16.mxu0 0
    %228 = vmatpush1.bf16.msra.mxu0 0
    %229 = vmatprep.subr.bf16.mxu0 0
    %230 = vmatpush1.bf16.msra.mxu0 0
    %231 = vmatprep.subr.bf16.mxu0 0
    %232 = vmatpush1.bf16.msra.mxu0 0
    %233 = vmatprep.mubr.bf16.mxu0 0
    %234 = vmatmul.mubr.bf16.gmra.mrb[0].mxu0 %v132
    %v235 = vpop.f32.mrb[0].mxu0
    %v236 = vadd.f32 %v152, %v235
    %v237 = vpop.f32.mrb[0].mxu0
    %v238 = vpop.f32.mrb[0].mxu0
    %v239 = vadd.f32 %v152, %v238
    %v240 = vpop.f32.mrb[0].mxu0
    %241 = vdwg.mxu0
    %v242 = vmul.f32 %v236, 0.1
    %v243 = vmul.f32 %v239, 0.1
    %v244 = vmax.f32 %v236, %v242
    %v245 = vmax.f32 %v239, %v243
    %v246 = vpack.c.bf16 %v245, %v244
    %s247 = scalar_lea.vmem [#allocation6], 64
    %v248 = vld [vmem:[%s247] sm:$0xf]
    %v249 = vld [vmem:[%s247 + $0x4] sm:$0xf]
    %v250 = vld [vmem:[%s247 + $0x8] sm:$0xf]
    %v251 = vld [vmem:[%s247 + $0xc] sm:$0xf]
    %v252 = vld [vmem:[%s247 + $0x10] sm:$0xf]
    %v253 = vld [vmem:[%s247 + $0x14] sm:$0xf]
    %v254 = vld [vmem:[%s247 + $0x18] sm:$0xf]
    %v255 = vld [vmem:[%s247 + $0x1c] sm:$0xf]
    %v256 = vld [vmem:[%s247 + $0x20] sm:$0xf]
    %v257 = vld [vmem:[%s247 + $0x24] sm:$0xf]
    %v258 = vld [vmem:[%s247 + $0x28] sm:$0xf]
    %v259 = vld [vmem:[%s247 + $0x2c] sm:$0xf]
    %v260 = vld [vmem:[%s247 + $0x30] sm:$0xf]
    %v261 = vld [vmem:[%s247 + $0x34] sm:$0xf]
    %v262 = vld [vmem:[%s247 + $0x38] sm:$0xf]
    %v263 = vld [vmem:[%s247 + $0x3c] sm:$0xf]
    %v264 = vlaneseq
    %v265 = vshrl.u32 %v264, 7
    %v266 = vsub.s32 2, %v265
    %v267 = vrot.slane %v59, %v266
    %v284 = vunpack.c.l.b16 %v248
    %v285 = vunpack.c.l.b16 %v249
    %v286 = vunpack.c.l.b16 %v250
    %v287 = vunpack.c.l.b16 %v251
    %v288 = vunpack.c.l.b16 %v252
    %v289 = vunpack.c.l.b16 %v253
    %v290 = vunpack.c.l.b16 %v254
    %v291 = vunpack.c.l.b16 %v255
    %v292 = vunpack.c.l.b16 %v256
    %v293 = vunpack.c.l.b16 %v257
    %v294 = vunpack.c.l.b16 %v258
    %v295 = vunpack.c.l.b16 %v259
    %v296 = vunpack.c.l.b16 %v260
    %v297 = vunpack.c.l.b16 %v261
    %v298 = vunpack.c.l.b16 %v262
    %v299 = vunpack.c.l.b16 %v263
    %v300 = vpack.c.b16 %v285, %v284
    %v301 = vpack.c.b16 %v287, %v286
    %v302 = vpack.c.b16 %v289, %v288
    %v303 = vpack.c.b16 %v291, %v290
    %v304 = vpack.c.b16 %v293, %v292
    %v305 = vpack.c.b16 %v295, %v294
    %v306 = vpack.c.b16 %v297, %v296
    %v307 = vpack.c.b16 %v299, %v298
    %316 = vmatprep.subr.bf16.mxu0 0
    %317 = vmatpush1.bf16.msra.mxu0 %v300
    %318 = vmatprep.subr.bf16.mxu0 0
    %319 = vmatpush1.bf16.msra.mxu0 %v301
    %320 = vmatprep.subr.bf16.mxu0 0
    %321 = vmatpush1.bf16.msra.mxu0 %v302
    %322 = vmatprep.subr.bf16.mxu0 0
    %323 = vmatpush1.bf16.msra.mxu0 %v303
    %324 = vmatprep.subr.bf16.mxu0 0
    %325 = vmatpush1.bf16.msra.mxu0 %v304
    %326 = vmatprep.subr.bf16.mxu0 0
    %327 = vmatpush1.bf16.msra.mxu0 %v305
    %328 = vmatprep.subr.bf16.mxu0 0
    %329 = vmatpush1.bf16.msra.mxu0 %v306
    %330 = vmatprep.subr.bf16.mxu0 0
    %331 = vmatpush1.bf16.msra.mxu0 %v307
    %332 = vmatprep.subr.bf16.mxu0 0
    %333 = vmatpush1.bf16.msra.mxu0 0
    %334 = vmatprep.subr.bf16.mxu0 0
    %335 = vmatpush1.bf16.msra.mxu0 0
    %336 = vmatprep.subr.bf16.mxu0 0
    %337 = vmatpush1.bf16.msra.mxu0 0
    %338 = vmatprep.subr.bf16.mxu0 0
    %339 = vmatpush1.bf16.msra.mxu0 0
    %340 = vmatprep.subr.bf16.mxu0 0
    %341 = vmatpush1.bf16.msra.mxu0 0
    %342 = vmatprep.subr.bf16.mxu0 0
    %343 = vmatpush1.bf16.msra.mxu0 0
    %344 = vmatprep.subr.bf16.mxu0 0
    %345 = vmatpush1.bf16.msra.mxu0 0
    %346 = vmatprep.subr.bf16.mxu0 0
    %347 = vmatpush1.bf16.msra.mxu0 0
    %348 = vmatprep.mubr.bf16.mxu0 0
    %349 = vmatmul.mubr.bf16.gmra.mrb[0].mxu0 %v246
    %v350 = vpop.f32.mrb[0].mxu0
    %v351 = vadd.f32 %v267, %v350
    %v352 = vpop.f32.mrb[0].mxu0
    %v353 = vpop.f32.mrb[0].mxu0
    %v354 = vadd.f32 %v267, %v353
    %v355 = vpop.f32.mrb[0].mxu0
    %356 = vdwg.mxu0
    %v357 = vmul.f32 %v351, 0.1
    %v358 = vmul.f32 %v354, 0.1
    %v359 = vmax.f32 %v351, %v357
    %v360 = vmax.f32 %v354, %v358
    %v361 = vpack.c.bf16 %v360, %v359
    %v362 = vadd.bf16 %v361, %v132
    %s363 = scalar_lea.vmem [#allocation6], 128
    %v364 = vld [vmem:[%s363] sm:$0xf]
    %v365 = vld [vmem:[%s363 + $0x4] sm:$0xf]
    %v366 = vld [vmem:[%s363 + $0x8] sm:$0xf]
    %v367 = vld [vmem:[%s363 + $0xc] sm:$0xf]
    %v368 = vld [vmem:[%s363 + $0x10] sm:$0xf]
    %v369 = vld [vmem:[%s363 + $0x14] sm:$0xf]
    %v370 = vld [vmem:[%s363 + $0x18] sm:$0xf]
    %v371 = vld [vmem:[%s363 + $0x1c] sm:$0xf]
    %v372 = vld [vmem:[%s363 + $0x20] sm:$0xf]
    %v373 = vld [vmem:[%s363 + $0x24] sm:$0xf]
    %v374 = vld [vmem:[%s363 + $0x28] sm:$0xf]
    %v375 = vld [vmem:[%s363 + $0x2c] sm:$0xf]
    %v376 = vld [vmem:[%s363 + $0x30] sm:$0xf]
    %v377 = vld [vmem:[%s363 + $0x34] sm:$0xf]
    %v378 = vld [vmem:[%s363 + $0x38] sm:$0xf]
    %v379 = vld [vmem:[%s363 + $0x3c] sm:$0xf]
    %v380 = vlaneseq
    %v381 = vshrl.u32 %v380, 7
    %v382 = vsub.s32 3, %v381
    %v383 = vrot.slane %v59, %v382
    %v400 = vunpack.c.l.b16 %v364
    %v401 = vunpack.c.l.b16 %v365
    %v402 = vunpack.c.l.b16 %v366
    %v403 = vunpack.c.l.b16 %v367
    %v404 = vunpack.c.l.b16 %v368
    %v405 = vunpack.c.l.b16 %v369
    %v406 = vunpack.c.l.b16 %v370
    %v407 = vunpack.c.l.b16 %v371
    %v408 = vunpack.c.l.b16 %v372
    %v409 = vunpack.c.l.b16 %v373
    %v410 = vunpack.c.l.b16 %v374
    %v411 = vunpack.c.l.b16 %v375
    %v412 = vunpack.c.l.b16 %v376
    %v413 = vunpack.c.l.b16 %v377
    %v414 = vunpack.c.l.b16 %v378
    %v415 = vunpack.c.l.b16 %v379
    %v416 = vpack.c.b16 %v401, %v400
    %v417 = vpack.c.b16 %v403, %v402
    %v418 = vpack.c.b16 %v405, %v404
    %v419 = vpack.c.b16 %v407, %v406
    %v420 = vpack.c.b16 %v409, %v408
    %v421 = vpack.c.b16 %v411, %v410
    %v422 = vpack.c.b16 %v413, %v412
    %v423 = vpack.c.b16 %v415, %v414
    %432 = vmatprep.subr.bf16.mxu0 0
    %433 = vmatpush1.bf16.msra.mxu0 %v416
    %434 = vmatprep.subr.bf16.mxu0 0
    %435 = vmatpush1.bf16.msra.mxu0 %v417
    %436 = vmatprep.subr.bf16.mxu0 0
    %437 = vmatpush1.bf16.msra.mxu0 %v418
    %438 = vmatprep.subr.bf16.mxu0 0
    %439 = vmatpush1.bf16.msra.mxu0 %v419
    %440 = vmatprep.subr.bf16.mxu0 0
    %441 = vmatpush1.bf16.msra.mxu0 %v420
    %442 = vmatprep.subr.bf16.mxu0 0
    %443 = vmatpush1.bf16.msra.mxu0 %v421
    %444 = vmatprep.subr.bf16.mxu0 0
    %445 = vmatpush1.bf16.msra.mxu0 %v422
    %446 = vmatprep.subr.bf16.mxu0 0
    %447 = vmatpush1.bf16.msra.mxu0 %v423
    %448 = vmatprep.subr.bf16.mxu0 0
    %449 = vmatpush1.bf16.msra.mxu0 0
    %450 = vmatprep.subr.bf16.mxu0 0
    %451 = vmatpush1.bf16.msra.mxu0 0
    %452 = vmatprep.subr.bf16.mxu0 0
    %453 = vmatpush1.bf16.msra.mxu0 0
    %454 = vmatprep.subr.bf16.mxu0 0
    %455 = vmatpush1.bf16.msra.mxu0 0
    %456 = vmatprep.subr.bf16.mxu0 0
    %457 = vmatpush1.bf16.msra.mxu0 0
    %458 = vmatprep.subr.bf16.mxu0 0
    %459 = vmatpush1.bf16.msra.mxu0 0
    %460 = vmatprep.subr.bf16.mxu0 0
    %461 = vmatpush1.bf16.msra.mxu0 0
    %462 = vmatprep.subr.bf16.mxu0 0
    %463 = vmatpush1.bf16.msra.mxu0 0
    %464 = vmatprep.mubr.bf16.mxu0 0
    %465 = vmatmul.mubr.bf16.gmra.mrb[0].mxu0 %v362
    %v466 = vpop.f32.mrb[0].mxu0
    %v467 = vadd.f32 %v383, %v466
    %v468 = vpop.f32.mrb[0].mxu0
    %v469 = vpop.f32.mrb[0].mxu0
    %v470 = vadd.f32 %v383, %v469
    %v471 = vpop.f32.mrb[0].mxu0
    %472 = vdwg.mxu0
    %v473 = vmul.f32 %v467, 0.1
    %v474 = vmul.f32 %v470, 0.1
    %v475 = vmax.f32 %v467, %v473
    %v476 = vmax.f32 %v470, %v474
    %v477 = vpack.c.bf16 %v476, %v475
    %s478 = scalar_lea.vmem [#allocation6], 192
    %v479 = vld [vmem:[%s478] sm:$0xf]
    %v480 = vld [vmem:[%s478 + $0x4] sm:$0xf]
    %v481 = vld [vmem:[%s478 + $0x8] sm:$0xf]
    %v482 = vld [vmem:[%s478 + $0xc] sm:$0xf]
    %v483 = vld [vmem:[%s478 + $0x10] sm:$0xf]
    %v484 = vld [vmem:[%s478 + $0x14] sm:$0xf]
    %v485 = vld [vmem:[%s478 + $0x18] sm:$0xf]
    %v486 = vld [vmem:[%s478 + $0x1c] sm:$0xf]
    %v487 = vld [vmem:[%s478 + $0x20] sm:$0xf]
    %v488 = vld [vmem:[%s478 + $0x24] sm:$0xf]
    %v489 = vld [vmem:[%s478 + $0x28] sm:$0xf]
    %v490 = vld [vmem:[%s478 + $0x2c] sm:$0xf]
    %v491 = vld [vmem:[%s478 + $0x30] sm:$0xf]
    %v492 = vld [vmem:[%s478 + $0x34] sm:$0xf]
    %v493 = vld [vmem:[%s478 + $0x38] sm:$0xf]
    %v494 = vld [vmem:[%s478 + $0x3c] sm:$0xf]
    %v495 = vlaneseq
    %v496 = vshrl.u32 %v495, 7
    %v497 = vsub.s32 4, %v496
    %v498 = vrot.slane %v59, %v497
    %v515 = vunpack.c.l.b16 %v479
    %v516 = vunpack.c.l.b16 %v480
    %v517 = vunpack.c.l.b16 %v481
    %v518 = vunpack.c.l.b16 %v482
    %v519 = vunpack.c.l.b16 %v483
    %v520 = vunpack.c.l.b16 %v484
    %v521 = vunpack.c.l.b16 %v485
    %v522 = vunpack.c.l.b16 %v486
    %v523 = vunpack.c.l.b16 %v487
    %v524 = vunpack.c.l.b16 %v488
    %v525 = vunpack.c.l.b16 %v489
    %v526 = vunpack.c.l.b16 %v490
    %v527 = vunpack.c.l.b16 %v491
    %v528 = vunpack.c.l.b16 %v492
    %v529 = vunpack.c.l.b16 %v493
    %v530 = vunpack.c.l.b16 %v494
    %v531 = vpack.c.b16 %v516, %v515
    %v532 = vpack.c.b16 %v518, %v517
    %v533 = vpack.c.b16 %v520, %v519
    %v534 = vpack.c.b16 %v522, %v521
    %v535 = vpack.c.b16 %v524, %v523
    %v536 = vpack.c.b16 %v526, %v525
    %v537 = vpack.c.b16 %v528, %v527
    %v538 = vpack.c.b16 %v530, %v529
    %547 = vmatprep.subr.bf16.mxu0 0
    %548 = vmatpush1.bf16.msra.mxu0 %v531
    %549 = vmatprep.subr.bf16.mxu0 0
    %550 = vmatpush1.bf16.msra.mxu0 %v532
    %551 = vmatprep.subr.bf16.mxu0 0
    %552 = vmatpush1.bf16.msra.mxu0 %v533
    %553 = vmatprep.subr.bf16.mxu0 0
    %554 = vmatpush1.bf16.msra.mxu0 %v534
    %555 = vmatprep.subr.bf16.mxu0 0
    %556 = vmatpush1.bf16.msra.mxu0 %v535
    %557 = vmatprep.subr.bf16.mxu0 0
    %558 = vmatpush1.bf16.msra.mxu0 %v536
    %559 = vmatprep.subr.bf16.mxu0 0
    %560 = vmatpush1.bf16.msra.mxu0 %v537
    %561 = vmatprep.subr.bf16.mxu0 0
    %562 = vmatpush1.bf16.msra.mxu0 %v538
    %563 = vmatprep.subr.bf16.mxu0 0
    %564 = vmatpush1.bf16.msra.mxu0 0
    %565 = vmatprep.subr.bf16.mxu0 0
    %566 = vmatpush1.bf16.msra.mxu0 0
    %567 = vmatprep.subr.bf16.mxu0 0
    %568 = vmatpush1.bf16.msra.mxu0 0
    %569 = vmatprep.subr.bf16.mxu0 0
    %570 = vmatpush1.bf16.msra.mxu0 0
    %571 = vmatprep.subr.bf16.mxu0 0
    %572 = vmatpush1.bf16.msra.mxu0 0
    %573 = vmatprep.subr.bf16.mxu0 0
    %574 = vmatpush1.bf16.msra.mxu0 0
    %575 = vmatprep.subr.bf16.mxu0 0
    %576 = vmatpush1.bf16.msra.mxu0 0
    %577 = vmatprep.subr.bf16.mxu0 0
    %578 = vmatpush1.bf16.msra.mxu0 0
    %579 = vmatprep.mubr.bf16.mxu0 0
    %580 = vmatmul.mubr.bf16.gmra.mrb[0].mxu0 %v477
    %v581 = vpop.f32.mrb[0].mxu0
    %v582 = vadd.f32 %v498, %v581
    %v583 = vpop.f32.mrb[0].mxu0
    %v584 = vpop.f32.mrb[0].mxu0
    %v585 = vadd.f32 %v498, %v584
    %v586 = vpop.f32.mrb[0].mxu0
    %587 = vdwg.mxu0
    %v588 = vmul.f32 %v582, 0.1
    %v589 = vmul.f32 %v585, 0.1
    %v590 = vmax.f32 %v582, %v588
    %v591 = vmax.f32 %v585, %v589
    %v592 = vpack.c.bf16 %v591, %v590
    %v593 = vadd.bf16 %v592, %v362
    %s594 = scalar_lea.vmem [#allocation6], 256
    %v595 = vld [vmem:[%s594] sm:$0xf]
    %v596 = vld [vmem:[%s594 + $0x4] sm:$0xf]
    %v597 = vld [vmem:[%s594 + $0x8] sm:$0xf]
    %v598 = vld [vmem:[%s594 + $0xc] sm:$0xf]
    %v599 = vld [vmem:[%s594 + $0x10] sm:$0xf]
    %v600 = vld [vmem:[%s594 + $0x14] sm:$0xf]
    %v601 = vld [vmem:[%s594 + $0x18] sm:$0xf]
    %v602 = vld [vmem:[%s594 + $0x1c] sm:$0xf]
    %v603 = vld [vmem:[%s594 + $0x20] sm:$0xf]
    %v604 = vld [vmem:[%s594 + $0x24] sm:$0xf]
    %v605 = vld [vmem:[%s594 + $0x28] sm:$0xf]
    %v606 = vld [vmem:[%s594 + $0x2c] sm:$0xf]
    %v607 = vld [vmem:[%s594 + $0x30] sm:$0xf]
    %v608 = vld [vmem:[%s594 + $0x34] sm:$0xf]
    %v609 = vld [vmem:[%s594 + $0x38] sm:$0xf]
    %v610 = vld [vmem:[%s594 + $0x3c] sm:$0xf]
    %v611 = vlaneseq
    %v612 = vshrl.u32 %v611, 7
    %v613 = vsub.s32 5, %v612
    %v614 = vrot.slane %v59, %v613
    %v631 = vunpack.c.l.b16 %v595
    %v632 = vunpack.c.l.b16 %v596
    %v633 = vunpack.c.l.b16 %v597
    %v634 = vunpack.c.l.b16 %v598
    %v635 = vunpack.c.l.b16 %v599
    %v636 = vunpack.c.l.b16 %v600
    %v637 = vunpack.c.l.b16 %v601
    %v638 = vunpack.c.l.b16 %v602
    %v639 = vunpack.c.l.b16 %v603
    %v640 = vunpack.c.l.b16 %v604
    %v641 = vunpack.c.l.b16 %v605
    %v642 = vunpack.c.l.b16 %v606
    %v643 = vunpack.c.l.b16 %v607
    %v644 = vunpack.c.l.b16 %v608
    %v645 = vunpack.c.l.b16 %v609
    %v646 = vunpack.c.l.b16 %v610
    %v647 = vpack.c.b16 %v632, %v631
    %v648 = vpack.c.b16 %v634, %v633
    %v649 = vpack.c.b16 %v636, %v635
    %v650 = vpack.c.b16 %v638, %v637
    %v651 = vpack.c.b16 %v640, %v639
    %v652 = vpack.c.b16 %v642, %v641
    %v653 = vpack.c.b16 %v644, %v643
    %v654 = vpack.c.b16 %v646, %v645
    %663 = vmatprep.subr.bf16.mxu0 0
    %664 = vmatpush1.bf16.msra.mxu0 %v647
    %665 = vmatprep.subr.bf16.mxu0 0
    %666 = vmatpush1.bf16.msra.mxu0 %v648
    %667 = vmatprep.subr.bf16.mxu0 0
    %668 = vmatpush1.bf16.msra.mxu0 %v649
    %669 = vmatprep.subr.bf16.mxu0 0
    %670 = vmatpush1.bf16.msra.mxu0 %v650
    %671 = vmatprep.subr.bf16.mxu0 0
    %672 = vmatpush1.bf16.msra.mxu0 %v651
    %673 = vmatprep.subr.bf16.mxu0 0
    %674 = vmatpush1.bf16.msra.mxu0 %v652
    %675 = vmatprep.subr.bf16.mxu0 0
    %676 = vmatpush1.bf16.msra.mxu0 %v653
    %677 = vmatprep.subr.bf16.mxu0 0
    %678 = vmatpush1.bf16.msra.mxu0 %v654
    %679 = vmatprep.subr.bf16.mxu0 0
    %680 = vmatpush1.bf16.msra.mxu0 0
    %681 = vmatprep.subr.bf16.mxu0 0
    %682 = vmatpush1.bf16.msra.mxu0 0
    %683 = vmatprep.subr.bf16.mxu0 0
    %684 = vmatpush1.bf16.msra.mxu0 0
    %685 = vmatprep.subr.bf16.mxu0 0
    %686 = vmatpush1.bf16.msra.mxu0 0
    %687 = vmatprep.subr.bf16.mxu0 0
    %688 = vmatpush1.bf16.msra.mxu0 0
    %689 = vmatprep.subr.bf16.mxu0 0
    %690 = vmatpush1.bf16.msra.mxu0 0
    %691 = vmatprep.subr.bf16.mxu0 0
    %692 = vmatpush1.bf16.msra.mxu0 0
    %693 = vmatprep.subr.bf16.mxu0 0
    %694 = vmatpush1.bf16.msra.mxu0 0
    %695 = vmatprep.mubr.bf16.mxu0 0
    %696 = vmatmul.mubr.bf16.gmra.mrb[0].mxu0 %v593
    %v697 = vpop.f32.mrb[0].mxu0
    %v698 = vadd.f32 %v614, %v697
    %v699 = vpop.f32.mrb[0].mxu0
    %v700 = vpop.f32.mrb[0].mxu0
    %v701 = vadd.f32 %v614, %v700
    %v702 = vpop.f32.mrb[0].mxu0
    %703 = vdwg.mxu0
    %v704 = vmul.f32 %v698, 0.1
    %v705 = vmul.f32 %v701, 0.1
    %v706 = vmax.f32 %v698, %v704
    %v707 = vmax.f32 %v701, %v705
    %v708 = vpack.c.bf16 %v707, %v706
    %s709 = scalar_lea.vmem [#allocation6], 320
    %v710 = vld [vmem:[%s709] sm:$0xf]
    %v711 = vld [vmem:[%s709 + $0x4] sm:$0xf]
    %v712 = vld [vmem:[%s709 + $0x8] sm:$0xf]
    %v713 = vld [vmem:[%s709 + $0xc] sm:$0xf]
    %v714 = vld [vmem:[%s709 + $0x10] sm:$0xf]
    %v715 = vld [vmem:[%s709 + $0x14] sm:$0xf]
    %v716 = vld [vmem:[%s709 + $0x18] sm:$0xf]
    %v717 = vld [vmem:[%s709 + $0x1c] sm:$0xf]
    %v718 = vld [vmem:[%s709 + $0x20] sm:$0xf]
    %v719 = vld [vmem:[%s709 + $0x24] sm:$0xf]
    %v720 = vld [vmem:[%s709 + $0x28] sm:$0xf]
    %v721 = vld [vmem:[%s709 + $0x2c] sm:$0xf]
    %v722 = vld [vmem:[%s709 + $0x30] sm:$0xf]
    %v723 = vld [vmem:[%s709 + $0x34] sm:$0xf]
    %v724 = vld [vmem:[%s709 + $0x38] sm:$0xf]
    %v725 = vld [vmem:[%s709 + $0x3c] sm:$0xf]
    %v726 = vlaneseq
    %v727 = vshrl.u32 %v726, 7
    %v728 = vsub.s32 6, %v727
    %v729 = vrot.slane %v59, %v728
    %v746 = vunpack.c.l.b16 %v710
    %v747 = vunpack.c.l.b16 %v711
    %v748 = vunpack.c.l.b16 %v712
    %v749 = vunpack.c.l.b16 %v713
    %v750 = vunpack.c.l.b16 %v714
    %v751 = vunpack.c.l.b16 %v715
    %v752 = vunpack.c.l.b16 %v716
    %v753 = vunpack.c.l.b16 %v717
    %v754 = vunpack.c.l.b16 %v718
    %v755 = vunpack.c.l.b16 %v719
    %v756 = vunpack.c.l.b16 %v720
    %v757 = vunpack.c.l.b16 %v721
    %v758 = vunpack.c.l.b16 %v722
    %v759 = vunpack.c.l.b16 %v723
    %v760 = vunpack.c.l.b16 %v724
    %v761 = vunpack.c.l.b16 %v725
    %v762 = vpack.c.b16 %v747, %v746
    %v763 = vpack.c.b16 %v749, %v748
    %v764 = vpack.c.b16 %v751, %v750
    %v765 = vpack.c.b16 %v753, %v752
    %v766 = vpack.c.b16 %v755, %v754
    %v767 = vpack.c.b16 %v757, %v756
    %v768 = vpack.c.b16 %v759, %v758
    %v769 = vpack.c.b16 %v761, %v760
    %778 = vmatprep.subr.bf16.mxu0 0
    %779 = vmatpush1.bf16.msra.mxu0 %v762
    %780 = vmatprep.subr.bf16.mxu0 0
    %781 = vmatpush1.bf16.msra.mxu0 %v763
    %782 = vmatprep.subr.bf16.mxu0 0
    %783 = vmatpush1.bf16.msra.mxu0 %v764
    %784 = vmatprep.subr.bf16.mxu0 0
    %785 = vmatpush1.bf16.msra.mxu0 %v765
    %786 = vmatprep.subr.bf16.mxu0 0
    %787 = vmatpush1.bf16.msra.mxu0 %v766
    %788 = vmatprep.subr.bf16.mxu0 0
    %789 = vmatpush1.bf16.msra.mxu0 %v767
    %790 = vmatprep.subr.bf16.mxu0 0
    %791 = vmatpush1.bf16.msra.mxu0 %v768
    %792 = vmatprep.subr.bf16.mxu0 0
    %793 = vmatpush1.bf16.msra.mxu0 %v769
    %794 = vmatprep.subr.bf16.mxu0 0
    %795 = vmatpush1.bf16.msra.mxu0 0
    %796 = vmatprep.subr.bf16.mxu0 0
    %797 = vmatpush1.bf16.msra.mxu0 0
    %798 = vmatprep.subr.bf16.mxu0 0
    %799 = vmatpush1.bf16.msra.mxu0 0
    %800 = vmatprep.subr.bf16.mxu0 0
    %801 = vmatpush1.bf16.msra.mxu0 0
    %802 = vmatprep.subr.bf16.mxu0 0
    %803 = vmatpush1.bf16.msra.mxu0 0
    %804 = vmatprep.subr.bf16.mxu0 0
    %805 = vmatpush1.bf16.msra.mxu0 0
    %806 = vmatprep.subr.bf16.mxu0 0
    %807 = vmatpush1.bf16.msra.mxu0 0
    %808 = vmatprep.subr.bf16.mxu0 0
    %809 = vmatpush1.bf16.msra.mxu0 0
    %810 = vmatprep.mubr.bf16.mxu0 0
    %811 = vmatmul.mubr.bf16.gmra.mrb[0].mxu0 %v708
    %v812 = vpop.f32.mrb[0].mxu0
    %v813 = vadd.f32 %v729, %v812
    %v814 = vpop.f32.mrb[0].mxu0
    %v815 = vpop.f32.mrb[0].mxu0
    %v816 = vadd.f32 %v729, %v815
    %v817 = vpop.f32.mrb[0].mxu0
    %818 = vdwg.mxu0
    %v819 = vtanh.pop %v813
    %v820 = vtanh.pop %v816
    %v821 = vpack.c.bf16 %v820, %v819
    %v823 = vunpack.c.l.b16 %v821
    %v824 = vunpack.c.h.b16 %v821
    %v825 = vpack.c.b16 %v823, %v823
    %v826 = vpack.c.b16 %v824, %v824
    %829 = vst [vmem:[%s4] sm:$0xf] %v825
    %830 = vst [vmem:[%s4 + $0x4] sm:$0xf] %v826
    // Predicated region
    $region30: #{line_model_forward.1} parent=1 // pred_check
      _
    $region31: #{line_model_forward.1} parent=1 // pred_check_branch
      %832 = sbr.rel (0) target = $region33
    $region32: #{line_model_forward.1} parent=1 // pred_region
      _
    $region33: #{line_model_forward.1} parent=1 // pred_fallthru
      _
    // Predicated region
    $region34: #{line_model_forward.1} parent=1 // pred_check
      _
    $region35: #{line_model_forward.1} parent=1 // pred_check_branch
      %834 = sbr.rel (0) target = $region37
    $region36: #{line_model_forward.1} parent=1 // pred_region
      _
    $region37: #{line_model_forward.1} parent=1 // pred_fallthru
      _
    %835 = vsyncpa [#allocation3], 1
    %836 = vsyncpa [#allocation5], 1

</llo_original>
